<compile_context>
chip_gen: v7x
topology: tpu7x:2x2x1
jax: 0.10.0
libtpu: 0.0.40
codegen_flags: <defaults>
</compile_context>

<pallas_src>
import jax
import jax.numpy as jnp
from jax.experimental import pallas as pl
from jax.experimental.pallas import tpu as pltpu

TILE_I = 128        # destination-node row tile for the attention pass
LANE = 128          # feature dims padded to lane width
SRC_TILE_CAP = 512  # cap on source (j) tile for the online-softmax pass
NEG_BIG = -1073741824.0   # -2**30: exactly representable in bf16 and f32


def _round_up(v, m):
    return (v + m - 1) // m * m


def _divisor_tile(n_pad, cap):
    """Largest multiple of TILE_I that is <= cap and divides n_pad."""
    t = min(cap, n_pad)
    t = (t // TILE_I) * TILE_I
    while n_pad % t:
        t -= TILE_I
    return t


def _elementwise_dtype():
    """bf16 logit/exp chain on v6e/newer (bf16 VPU/EUP); f32 on v5e and older."""
    try:
        kind = jax.devices()[0].device_kind.lower()
    except Exception:  # pragma: no cover
        return jnp.float32
    for old in ("v2", "v3", "v4", "v5"):
        if old in kind:
            return jnp.float32
    return jnp.bfloat16


def _vmem_limit_bytes():
    """~0.75 x physical VMEM (96 MiB on v5e/v6e, 48 MiB on v7x)."""
    try:
        cap = int(pltpu.get_tpu_info().vmem_capacity_bytes)
    except Exception:  # pragma: no cover
        cap = 64 * 1024 * 1024
    return max(32 * 1024 * 1024, (cap * 3) // 4)


# -----------------------------------------------------------------------------
# Pass 1: fused projection  [h | alpha] = x_pad @ W_aug, where W_aug packs
#   cols [0:d)            -> W                  (h = x @ W)
#   col  d_pad_h          -> W @ a_dst          (alpha_dst[i] = h[i] . a_dst)
#   col  d_pad_h + 1      -> W @ a_src          (alpha_src[j] = h[j] . a_src)
# so the attention-vector projections ride along the main MXU pass.  h is
# written in bf16; the logit columns are emitted as a separate small f32
# output split at the lane-aligned boundary d_pad_h.
# -----------------------------------------------------------------------------
def project_kernel(x_ref, w_ref, h_ref, alpha_ref):
    acc = jnp.dot(x_ref[...].astype(jnp.bfloat16), w_ref[...],
                  preferred_element_type=jnp.float32)
    d_h = h_ref.shape[1]
    h_ref[...] = acc[:, :d_h].astype(jnp.bfloat16)
    alpha_ref[...] = acc[:, d_h:]            # [tile, 128] f32; cols 0/1 used


def project(x_pad, w_aug, d_pad_h, *, tile_i, vmem_limit):
    n_pad, f_pad = x_pad.shape
    d_full = w_aug.shape[1]                  # d_pad_h + LANE
    return pl.pallas_call(
        project_kernel,
        out_shape=(jax.ShapeDtypeStruct((n_pad, d_pad_h), jnp.bfloat16),
                   jax.ShapeDtypeStruct((n_pad, LANE), jnp.float32)),
        grid=(n_pad // tile_i,),
        in_specs=[
            pl.BlockSpec((tile_i, f_pad), lambda i: (i, 0)),   # x row tile (bf16)
            pl.BlockSpec((f_pad, d_full), lambda i: (0, 0)),   # W_aug (bf16, resident)
        ],
        out_specs=(pl.BlockSpec((tile_i, d_pad_h), lambda i: (i, 0)),
                   pl.BlockSpec((tile_i, LANE), lambda i: (i, 0))),
        compiler_params=pltpu.CompilerParams(
            dimension_semantics=("parallel",),
            vmem_limit_bytes=vmem_limit),
    )(x_pad, w_aug)


# -----------------------------------------------------------------------------
# Pass 2: masked softmax attention + aggregation + ReLU, flash-style online
# softmax over source tiles (grid = (row_tiles, src_tiles), src axis last /
# "arbitrary").  VMEM per step is bounded independent of N.
# -----------------------------------------------------------------------------
def make_attn_kernel(compute_dtype):
    cdt = compute_dtype

    def kernel(adst_ref, asrc_ref, h_ref, adj_ref, o_ref, m_sc, l_sc, acc_sc):
        j = pl.program_id(1)

        @pl.when(j == 0)
        def _init():
            m_sc[...] = jnp.full(m_sc.shape, NEG_BIG, m_sc.dtype)
            l_sc[...] = jnp.zeros(l_sc.shape, l_sc.dtype)
            acc_sc[...] = jnp.zeros(acc_sc.shape, acc_sc.dtype)

        # attention logits for this (dst-row tile, src tile)
        e = adst_ref[...].astype(cdt) + asrc_ref[...].astype(cdt)   # [TI,1]+[1,TJ]
        e = jnp.maximum(e, 0.2 * e)                 # LeakyReLU(0.2), fused mul+max
        e = jnp.where(adj_ref[...] > 0, e, NEG_BIG)  # int8 adjacency mask

        # online softmax (m/l/acc carried in f32 scratch).  NEG_BIG is exactly
        # representable in bf16/f32, so all-masked tiles give exp(0)=1 garbage
        # that a later exp(NEG_BIG - m_real)=0 correction wipes out; self-loops
        # guarantee every row eventually sees a real edge.
        m_prev = m_sc[...]
        m_new = jnp.maximum(
            m_prev, jnp.max(e, axis=1, keepdims=True).astype(jnp.float32))
        corr = jnp.exp(m_prev - m_new)                        # [TI,1] f32 (EUP)
        p = jnp.exp(e - m_new.astype(cdt))                    # [TI,TJ] in cdt
        l_sc[...] = corr * l_sc[...] + jnp.sum(p, axis=1, keepdims=True,
                                               dtype=jnp.float32)
        p_mx = p if p.dtype == jnp.bfloat16 else p.astype(jnp.bfloat16)
        acc_sc[...] = corr * acc_sc[...] + jnp.dot(
            p_mx, h_ref[...], preferred_element_type=jnp.float32)
        m_sc[...] = m_new

        @pl.when(j == pl.num_programs(1) - 1)
        def _finalize():
            # l >= 1 thanks to self-loops, so no epsilon guard is needed.
            inv = pl.reciprocal(l_sc[...], approx=True)       # EUP, ~free
            # batch_norm(type_norm='None') is identity; final ReLU
            o_ref[...] = jnp.maximum(acc_sc[...] * inv, 0.0).astype(o_ref.dtype)

    return kernel


def gat_attention(adst, asrc, h, adj, *, out_dtype, compute_dtype,
                  tile_i, tile_j, vmem_limit):
    n_pad, d_pad_h = h.shape
    return pl.pallas_call(
        make_attn_kernel(compute_dtype),
        out_shape=jax.ShapeDtypeStruct((n_pad, d_pad_h), out_dtype),
        grid=(n_pad // tile_i, n_pad // tile_j),
        in_specs=[
            pl.BlockSpec((tile_i, 1), lambda i, j: (i, 0)),        # alpha_dst rows
            pl.BlockSpec((1, tile_j), lambda i, j: (0, j)),        # alpha_src cols
            pl.BlockSpec((tile_j, d_pad_h), lambda i, j: (j, 0)),  # h src tile (bf16)
            pl.BlockSpec((tile_i, tile_j), lambda i, j: (i, j)),   # int8 adjacency
        ],
        out_specs=pl.BlockSpec((tile_i, d_pad_h), lambda i, j: (i, 0)),
        scratch_shapes=[
            pltpu.VMEM((tile_i, 1), jnp.float32),       # running max m
            pltpu.VMEM((tile_i, 1), jnp.float32),       # running denom l
            pltpu.VMEM((tile_i, d_pad_h), jnp.float32),  # running accumulator
        ],
        compiler_params=pltpu.CompilerParams(
            dimension_semantics=("parallel", "arbitrary"),
            vmem_limit_bytes=vmem_limit),
    )(adst, asrc, h, adj)


# -----------------------------------------------------------------------------
# Wrapper plumbing (parameter packing, padding, adjacency construction)
# -----------------------------------------------------------------------------
def build_w_aug(w, a_dst, a_src, f_pad, d_pad_h):
    f, d = w.shape
    w_aug = jnp.zeros((f_pad, d_pad_h + LANE), jnp.float32)
    w_aug = w_aug.at[:f, :d].set(w)
    w_aug = w_aug.at[:f, d_pad_h].set((w @ a_dst)[:, 0])        # folds alpha_dst
    w_aug = w_aug.at[:f, d_pad_h + 1].set((w @ a_src.T)[:, 0])  # folds alpha_src
    return w_aug.astype(jnp.bfloat16)                            # MXU operand dtype


def gat_layer(x_pad, w_aug, d_pad_h, adj, *, out_dtype, compute_dtype,
              proj_tile, tile_j, vmem_limit):
    """One GATConv(heads=1, concat=True, bias=False) + identity norm + ReLU."""
    h, alpha = project(x_pad, w_aug, d_pad_h, tile_i=proj_tile,
                       vmem_limit=vmem_limit)
    adst = alpha[:, 0:1]            # [N_pad, 1] f32
    asrc = alpha[:, 1:2].T          # [1, N_pad] f32
    return gat_attention(adst, asrc, h, adj, out_dtype=out_dtype,
                         compute_dtype=compute_dtype, tile_i=TILE_I,
                         tile_j=tile_j, vmem_limit=vmem_limit)


def edge_index_to_adj(edge_index, n_pad):
    """Dense int8 mask: adj[dst, src] = 1 for each edge, plus self-loops."""
    src, dst = edge_index[0], edge_index[1]
    adj = jnp.zeros((n_pad, n_pad), jnp.int8).at[dst, src].set(1)
    diag = jnp.arange(n_pad)
    adj = adj.at[diag, diag].set(1)   # PyG GATConv add_self_loops=True default
    return adj


def gat_forward(x, edge_index, params, num_layers):
    n, f = x.shape
    n_pad = _round_up(n, TILE_I)
    adj = edge_index_to_adj(edge_index, n_pad)

    compute_dtype = _elementwise_dtype()
    vmem_limit = _vmem_limit_bytes()
    proj_cap = 256 if compute_dtype == jnp.float32 else 512   # v5e vs v6e/v7x
    proj_tile = _divisor_tile(n_pad, proj_cap)
    tile_j = _divisor_tile(n_pad, SRC_TILE_CAP)

    f_pad = _round_up(f, LANE)
    # Inter-layer activations (and the first projection input) are bf16; the
    # MXU consumes bf16 regardless.
    x_pad = jnp.zeros((n_pad, f_pad), jnp.bfloat16).at[:n, :f].set(
        x.astype(jnp.bfloat16))

    for i in range(num_layers):
        # TODO(synk): F.dropout (feature + attention dropout) is training-only
        # and identity in eval mode, so it is intentionally omitted.
        # TODO(synk): batch_norm with type_norm != 'None' (group/pair norms) is
        # not implemented; type_norm='None' is the identity and is assumed here.
        w, a_dst, a_src = params[i]
        d = w.shape[1]
        d_pad_h = _round_up(d, LANE)
        w_aug = build_w_aug(w, a_dst, a_src, x_pad.shape[1], d_pad_h)
        out_dtype = jnp.float32 if i == num_layers - 1 else jnp.bfloat16
        x_pad = gat_layer(x_pad, w_aug, d_pad_h, adj, out_dtype=out_dtype,
                          compute_dtype=compute_dtype, proj_tile=proj_tile,
                          tile_j=tile_j, vmem_limit=vmem_limit)

    d_last = params[-1][0].shape[1]
    return x_pad[:n, :d_last]


if __name__ == "__main__":
    # Small, TPU-friendly synthetic config (num_layers=2, type_norm='None').
    N = 256            # number of graph nodes (2 row tiles of 128)
    num_feats = 64
    dim_hidden = 64
    num_classes = 32
    num_layers = 2
    E = 1024           # number of directed edges

    key = jax.random.PRNGKey(0)
    kx, ke1, ke2, kw1, kw2, ka1, ka2 = jax.random.split(key, 7)

    # node features and random edge_index [2, E]
    x = jax.random.normal(kx, (N, num_feats), dtype=jnp.float32)
    src = jax.random.randint(ke1, (E,), 0, N)
    dst = jax.random.randint(ke2, (E,), 0, N)
    edge_index = jnp.stack([src, dst], axis=0)

    # deterministic parameter init (Glorot-ish scaling)
    def glorot(k, shape):
        fan = shape[0] + shape[1]
        return jax.random.normal(k, shape, jnp.float32) * jnp.sqrt(2.0 / fan)

    w1 = glorot(kw1, (num_feats, dim_hidden))
    w2 = glorot(kw2, (dim_hidden, num_classes))
    ka1d, ka1s = jax.random.split(ka1)
    ka2d, ka2s = jax.random.split(ka2)
    a_dst1 = glorot(ka1d, (dim_hidden, 1))
    a_src1 = glorot(ka1s, (1, dim_hidden))
    a_dst2 = glorot(ka2d, (num_classes, 1))
    a_src2 = glorot(ka2s, (1, num_classes))

    params = [(w1, a_dst1, a_src1), (w2, a_dst2, a_src2)]

    out = gat_forward(x, edge_index, params, num_layers)
    out = jax.block_until_ready(out)

    assert out.shape == (N, num_classes)
    assert out.dtype == jnp.float32
    assert bool(jnp.all(jnp.isfinite(out)))
    assert bool(jnp.all(out >= 0.0))   # final ReLU
    print("KERNEL_OK")
</pallas_src>

<mosaic_0001>
module attributes {stable_mosaic.version = 11 : i64} {
  func.func @project_kernel(%arg0: i32, %arg1: memref<256x128xbf16, #tpu.memory_space<vmem>>, %arg2: memref<128x256xbf16, #tpu.memory_space<vmem>>, %arg3: memref<256x128xbf16, #tpu.memory_space<vmem>>, %arg4: memref<256x128xf32, #tpu.memory_space<vmem>>) attributes {dimension_semantics = [#tpu.dimension_semantics<parallel>], iteration_bounds = array<i64: 1>, scalar_prefetch = 0 : i64, scratch_operands = 0 : i64, tpu.core_type = #tpu.core_type<tc>, window_params = [{transform_indices = @transform_0, window_bounds = array<i64: 256, 128>}, {pipeline_mode = #tpu.pipeline_mode<synchronous>, transform_indices = @transform_1, window_bounds = array<i64: 128, 256>}, {transform_indices = @transform_2, window_bounds = array<i64: 256, 128>}, {transform_indices = @transform_3, window_bounds = array<i64: 256, 128>}]} {
    %c0 = arith.constant 0 : index
    %c0_0 = arith.constant 0 : index
    %0 = vector.load %arg1[%c0, %c0_0] : memref<256x128xbf16, #tpu.memory_space<vmem>>, vector<256x128xbf16>
    %c0_1 = arith.constant 0 : index
    %c0_2 = arith.constant 0 : index
    %1 = vector.load %arg2[%c0_1, %c0_2] : memref<128x256xbf16, #tpu.memory_space<vmem>>, vector<128x256xbf16>
    %cst = arith.constant dense<0.000000e+00> : vector<256x256xf32>
    %2 = tpu.matmul %0, %1, %cst {dimension_numbers = #tpu.dot_dimension_numbers<[1], [0], [0], [1], [0, 0, 1, 1], [], []>} : vector<256x128xbf16>, vector<128x256xbf16>, vector<256x256xf32> -> vector<256x256xf32>
    %3 = vector.extract_strided_slice %2 {offsets = [0, 0], sizes = [256, 128], strides = [1, 1]} : vector<256x256xf32> to vector<256x128xf32>
    %4 = arith.truncf %3 : vector<256x128xf32> to vector<256x128xbf16>
    %c0_3 = arith.constant 0 : index
    %c0_4 = arith.constant 0 : index
    %5 = vector.load %arg3[%c0_3, %c0_4] : memref<256x128xbf16, #tpu.memory_space<vmem>>, vector<256x128xbf16>
    tpu.vector_store %arg3[%c0_3, %c0_4], %4 {strides = array<i32>} : memref<256x128xbf16, #tpu.memory_space<vmem>>, vector<256x128xbf16>,
    %6 = vector.extract_strided_slice %2 {offsets = [0, 128], sizes = [256, 128], strides = [1, 1]} : vector<256x256xf32> to vector<256x128xf32>
    %c0_5 = arith.constant 0 : index
    %c0_6 = arith.constant 0 : index
    %7 = vector.load %arg4[%c0_5, %c0_6] : memref<256x128xf32, #tpu.memory_space<vmem>>, vector<256x128xf32>
    tpu.vector_store %arg4[%c0_5, %c0_6], %6 {strides = array<i32>} : memref<256x128xf32, #tpu.memory_space<vmem>>, vector<256x128xf32>,
    return
  }
  func.func @transform_0(%arg0: i32) -> (i32, i32) {
    %c0_i32 = arith.constant 0 : i32
    %c0_i32_0 = arith.constant 0 : i32
    return %arg0, %c0_i32 : i32, i32
  }
  func.func @transform_1(%arg0: i32) -> (i32, i32) {
    %c0_i32 = arith.constant 0 : i32
    %c0_i32_0 = arith.constant 0 : i32
    %c0_i32_1 = arith.constant 0 : i32
    return %c0_i32, %c0_i32_0 : i32, i32
  }
  func.func @transform_2(%arg0: i32) -> (i32, i32) {
    %c0_i32 = arith.constant 0 : i32
    %c0_i32_0 = arith.constant 0 : i32
    return %arg0, %c0_i32 : i32, i32
  }
  func.func @transform_3(%arg0: i32) -> (i32, i32) {
    %c0_i32 = arith.constant 0 : i32
    %c0_i32_0 = arith.constant 0 : i32
    return %arg0, %c0_i32 : i32, i32
  }
}

</mosaic_0001>

<llo_original>
// kernel: tpu_custom_call.1
$region0: #{tpu_custom_call.1}
  #allocation0 [shape = 'u32[]', space=smem, size = 0x4, offset = 0x4, fixed_abs, tag = 'smem constant byte address 0x4 - core index']
  #allocation1 [shape = 'u32[144,128]{1,0:T(1,128)}', space=vmem, size = 0x12000, scoped, tag = 'internal scratch']
  %s0 = inlined_call_operand.hbm [shape: bf16[256,128], index: 0, kind: input, shape index: {}]
  %s1 = inlined_call_operand.hbm [shape: bf16[128,256], index: 1, kind: input, shape index: {}]
  %s2 = inlined_call_operand.hbm [shape: bf16[256,128], index: 2, kind: output, shape index: {0}]
  %s3 = inlined_call_operand.hbm [shape: f32[256,128], index: 3, kind: output, shape index: {1}]
  %4 = xla_tuple %s2, %s3
  %s5 = sld [smem:[#allocation0]]
  $region34: #{tpu_custom_call.1} parent=0
    _
  %s7 = ssub.s32 1, %s5
  %s8 = scalar_select 0, %s7, %s5
  $region1: #{tpu_custom_call.1} parent=0
    #allocation2 [shape = 'u8[65536]{0}', space=vmem, size = 0x10000, scoped, tag = 'input window, operand 0, single buffered']
    #allocation3 [shape = 's32[1]{0}', space=sflag, size = 0x4, scoped, tag = 'scoped memory for tpu_custom_call.1']
    #allocation4 [shape = 's32[1]{0}', space=sflag, size = 0x4, scoped, tag = 'scoped memory for tpu_custom_call.1']
    #allocation5 [shape = 'u8[65536]{0}', space=vmem, size = 0x10000, scoped, tag = 'input window, operand 1, single buffered']
    #allocation6 [shape = 's32[1]{0}', space=sflag, size = 0x4, scoped, tag = 'scoped memory for tpu_custom_call.1']
    #allocation7 [shape = 'u8[65536]{0}', space=vmem, size = 0x10000, scoped, tag = 'output window, operand 0, single buffered']
    #allocation8 [shape = 'u8[131072]{0}', space=vmem, size = 0x20000, scoped, tag = 'output window, operand 1, single buffered']
    #allocation9 [shape = 's32[1]{0}', space=sflag, size = 0x4, scoped, tag = 'scoped memory for tpu_custom_call.1']
    %9 = vsyncpa [#allocation3], 0
    %10 = vsyncpa [#allocation6], 0
    %11 = vsyncpa [#allocation4], 0
    %12 = vsyncpa [#allocation9], 0
    // Predicated region
    $region2: #{tpu_custom_call.1} parent=1 // pred_check
      _
    $region3: #{tpu_custom_call.1} parent=1 // pred_check_branch
      %14 = sbr.rel (0) target = $region5
    $region4: #{tpu_custom_call.1} parent=1 // pred_region
      %s16 = ssub.s32 2048, 2048
      %17 = vsyncadd [#allocation3], %s16
      %s18 = sshll.u32 [#allocation2], 4
      %s19 = int_to_ptr.vmem [resolvable:$true] %s18
      %24 = dma.hbm_to_vmem [thread:$0]  %s0, 2048, %s19, [#allocation3], 64, 64, 4
    $region5: #{tpu_custom_call.1} parent=1 // pred_fallthru
      _
    // Predicated region
    $region6: #{tpu_custom_call.1} parent=1 // pred_check
      _
    $region7: #{tpu_custom_call.1} parent=1 // pred_check_branch
      %26 = sbr.rel (0) target = $region9
    $region8: #{tpu_custom_call.1} parent=1 // pred_region
      %s28 = ssub.s32 2048, 2048
      %29 = vsyncadd [#allocation6], %s28
      %s30 = sshll.u32 [#allocation5], 4
      %s31 = int_to_ptr.vmem [resolvable:$true] %s30
      %36 = dma.hbm_to_vmem [thread:$0]  %s1, 2048, %s31, [#allocation6], 128, 128, 8
    $region9: #{tpu_custom_call.1} parent=1 // pred_fallthru
      _
    // Predicated region
    $region10: #{tpu_custom_call.1} parent=1 // pred_check
      _
    $region11: #{tpu_custom_call.1} parent=1 // pred_check_branch
      %38 = sbr.rel (0) target = $region13
    $region12: #{tpu_custom_call.1} parent=1 // pred_region
      %39 = dma.done [#allocation3], 2048
    $region13: #{tpu_custom_call.1} parent=1 // pred_fallthru
      _
    // Predicated region
    $region14: #{tpu_custom_call.1} parent=1 // pred_check
      _
    $region15: #{tpu_custom_call.1} parent=1 // pred_check_branch
      %41 = sbr.rel (0) target = $region17
    $region16: #{tpu_custom_call.1} parent=1 // pred_region
      %42 = dma.done [#allocation6], 2048
    $region17: #{tpu_custom_call.1} parent=1 // pred_fallthru
      _
    %v44 = vld [vmem:[#allocation2] sm:$0xf]
    %v45 = vld [vmem:[#allocation2 + $0x4] sm:$0xf]
    %v46 = vld [vmem:[#allocation2 + $0x8] sm:$0xf]
    %v47 = vld [vmem:[#allocation2 + $0xc] sm:$0xf]
    %v48 = vld [vmem:[#allocation2 + $0x10] sm:$0xf]
    %v49 = vld [vmem:[#allocation2 + $0x14] sm:$0xf]
    %v50 = vld [vmem:[#allocation2 + $0x18] sm:$0xf]
    %v51 = vld [vmem:[#allocation2 + $0x1c] sm:$0xf]
    %v52 = vld [vmem:[#allocation2 + $0x20] sm:$0xf]
    %v53 = vld [vmem:[#allocation2 + $0x24] sm:$0xf]
    %v54 = vld [vmem:[#allocation2 + $0x28] sm:$0xf]
    %v55 = vld [vmem:[#allocation2 + $0x2c] sm:$0xf]
    %v56 = vld [vmem:[#allocation2 + $0x30] sm:$0xf]
    %v57 = vld [vmem:[#allocation2 + $0x34] sm:$0xf]
    %v58 = vld [vmem:[#allocation2 + $0x38] sm:$0xf]
    %v59 = vld [vmem:[#allocation2 + $0x3c] sm:$0xf]
    %v60 = vld [vmem:[#allocation2 + $0x40] sm:$0xf]
    %v61 = vld [vmem:[#allocation2 + $0x44] sm:$0xf]
    %v62 = vld [vmem:[#allocation2 + $0x48] sm:$0xf]
    %v63 = vld [vmem:[#allocation2 + $0x4c] sm:$0xf]
    %v64 = vld [vmem:[#allocation2 + $0x50] sm:$0xf]
    %v65 = vld [vmem:[#allocation2 + $0x54] sm:$0xf]
    %v66 = vld [vmem:[#allocation2 + $0x58] sm:$0xf]
    %v67 = vld [vmem:[#allocation2 + $0x5c] sm:$0xf]
    %v68 = vld [vmem:[#allocation2 + $0x60] sm:$0xf]
    %v69 = vld [vmem:[#allocation2 + $0x64] sm:$0xf]
    %v70 = vld [vmem:[#allocation2 + $0x68] sm:$0xf]
    %v71 = vld [vmem:[#allocation2 + $0x6c] sm:$0xf]
    %v72 = vld [vmem:[#allocation2 + $0x70] sm:$0xf]
    %v73 = vld [vmem:[#allocation2 + $0x74] sm:$0xf]
    %v74 = vld [vmem:[#allocation2 + $0x78] sm:$0xf]
    %v75 = vld [vmem:[#allocation2 + $0x7c] sm:$0xf]
    %v76 = vld [vmem:[#allocation5] sm:$0xff]
    %v77 = vld [vmem:[#allocation5 + $0x8] sm:$0xff]
    %v78 = vld [vmem:[#allocation5 + $0x10] sm:$0xff]
    %v79 = vld [vmem:[#allocation5 + $0x18] sm:$0xff]
    %v80 = vld [vmem:[#allocation5 + $0x20] sm:$0xff]
    %v81 = vld [vmem:[#allocation5 + $0x28] sm:$0xff]
    %v82 = vld [vmem:[#allocation5 + $0x30] sm:$0xff]
    %v83 = vld [vmem:[#allocation5 + $0x38] sm:$0xff]
    %v84 = vld [vmem:[#allocation5 + $0x40] sm:$0xff]
    %v85 = vld [vmem:[#allocation5 + $0x48] sm:$0xff]
    %v86 = vld [vmem:[#allocation5 + $0x50] sm:$0xff]
    %v87 = vld [vmem:[#allocation5 + $0x58] sm:$0xff]
    %v88 = vld [vmem:[#allocation5 + $0x60] sm:$0xff]
    %v89 = vld [vmem:[#allocation5 + $0x68] sm:$0xff]
    %v90 = vld [vmem:[#allocation5 + $0x70] sm:$0xff]
    %v91 = vld [vmem:[#allocation5 + $0x78] sm:$0xff]
    %v124 = vunpack.c.l.b16 %v44
    %v125 = vunpack.c.l.b16 %v45
    %v126 = vunpack.c.l.b16 %v46
    %v127 = vunpack.c.l.b16 %v47
    %v128 = vunpack.c.l.b16 %v48
    %v129 = vunpack.c.l.b16 %v49
    %v130 = vunpack.c.l.b16 %v50
    %v131 = vunpack.c.l.b16 %v51
    %v132 = vunpack.c.l.b16 %v52
    %v133 = vunpack.c.l.b16 %v53
    %v134 = vunpack.c.l.b16 %v54
    %v135 = vunpack.c.l.b16 %v55
    %v136 = vunpack.c.l.b16 %v56
    %v137 = vunpack.c.l.b16 %v57
    %v138 = vunpack.c.l.b16 %v58
    %v139 = vunpack.c.l.b16 %v59
    %v140 = vunpack.c.l.b16 %v60
    %v141 = vunpack.c.l.b16 %v61
    %v142 = vunpack.c.l.b16 %v62
    %v143 = vunpack.c.l.b16 %v63
    %v144 = vunpack.c.l.b16 %v64
    %v145 = vunpack.c.l.b16 %v65
    %v146 = vunpack.c.l.b16 %v66
    %v147 = vunpack.c.l.b16 %v67
    %v148 = vunpack.c.l.b16 %v68
    %v149 = vunpack.c.l.b16 %v69
    %v150 = vunpack.c.l.b16 %v70
    %v151 = vunpack.c.l.b16 %v71
    %v152 = vunpack.c.l.b16 %v72
    %v153 = vunpack.c.l.b16 %v73
    %v154 = vunpack.c.l.b16 %v74
    %v155 = vunpack.c.l.b16 %v75
    %v156 = vpack.c.b16 %v125, %v124
    %v157 = vpack.c.b16 %v127, %v126
    %v158 = vpack.c.b16 %v129, %v128
    %v159 = vpack.c.b16 %v131, %v130
    %v160 = vpack.c.b16 %v133, %v132
    %v161 = vpack.c.b16 %v135, %v134
    %v162 = vpack.c.b16 %v137, %v136
    %v163 = vpack.c.b16 %v139, %v138
    %v164 = vpack.c.b16 %v141, %v140
    %v165 = vpack.c.b16 %v143, %v142
    %v166 = vpack.c.b16 %v145, %v144
    %v167 = vpack.c.b16 %v147, %v146
    %v168 = vpack.c.b16 %v149, %v148
    %v169 = vpack.c.b16 %v151, %v150
    %v170 = vpack.c.b16 %v153, %v152
    %v171 = vpack.c.b16 %v155, %v154
    %v204 = vunpack.c.l.b16 %v76
    %v205 = vunpack.c.h.b16 %v76
    %v206 = vunpack.c.l.b16 %v77
    %v207 = vunpack.c.h.b16 %v77
    %v208 = vunpack.c.l.b16 %v78
    %v209 = vunpack.c.h.b16 %v78
    %v210 = vunpack.c.l.b16 %v79
    %v211 = vunpack.c.h.b16 %v79
    %v212 = vunpack.c.l.b16 %v80
    %v213 = vunpack.c.h.b16 %v80
    %v214 = vunpack.c.l.b16 %v81
    %v215 = vunpack.c.h.b16 %v81
    %v216 = vunpack.c.l.b16 %v82
    %v217 = vunpack.c.h.b16 %v82
    %v218 = vunpack.c.l.b16 %v83
    %v219 = vunpack.c.h.b16 %v83
    %v220 = vunpack.c.l.b16 %v84
    %v221 = vunpack.c.h.b16 %v84
    %v222 = vunpack.c.l.b16 %v85
    %v223 = vunpack.c.h.b16 %v85
    %v224 = vunpack.c.l.b16 %v86
    %v225 = vunpack.c.h.b16 %v86
    %v226 = vunpack.c.l.b16 %v87
    %v227 = vunpack.c.h.b16 %v87
    %v228 = vunpack.c.l.b16 %v88
    %v229 = vunpack.c.h.b16 %v88
    %v230 = vunpack.c.l.b16 %v89
    %v231 = vunpack.c.h.b16 %v89
    %v232 = vunpack.c.l.b16 %v90
    %v233 = vunpack.c.h.b16 %v90
    %v234 = vunpack.c.l.b16 %v91
    %v235 = vunpack.c.h.b16 %v91
    %v236 = vpack.c.b16 %v206, %v204
    %v237 = vpack.c.b16 %v207, %v205
    %v238 = vpack.c.b16 %v210, %v208
    %v239 = vpack.c.b16 %v211, %v209
    %v240 = vpack.c.b16 %v214, %v212
    %v241 = vpack.c.b16 %v215, %v213
    %v242 = vpack.c.b16 %v218, %v216
    %v243 = vpack.c.b16 %v219, %v217
    %v244 = vpack.c.b16 %v222, %v220
    %v245 = vpack.c.b16 %v223, %v221
    %v246 = vpack.c.b16 %v226, %v224
    %v247 = vpack.c.b16 %v227, %v225
    %v248 = vpack.c.b16 %v230, %v228
    %v249 = vpack.c.b16 %v231, %v229
    %v250 = vpack.c.b16 %v234, %v232
    %v251 = vpack.c.b16 %v235, %v233
    %268 = vmatprep.subr.bf16.mxu0 %v237
    %269 = vmatpush1.bf16.msra.mxu0 %v236
    %270 = vmatprep.subr.bf16.mxu0 %v239
    %271 = vmatpush1.bf16.msra.mxu0 %v238
    %272 = vmatprep.subr.bf16.mxu0 %v241
    %273 = vmatpush1.bf16.msra.mxu0 %v240
    %274 = vmatprep.subr.bf16.mxu0 %v243
    %275 = vmatpush1.bf16.msra.mxu0 %v242
    %276 = vmatprep.subr.bf16.mxu0 %v245
    %277 = vmatpush1.bf16.msra.mxu0 %v244
    %278 = vmatprep.subr.bf16.mxu0 %v247
    %279 = vmatpush1.bf16.msra.mxu0 %v246
    %280 = vmatprep.subr.bf16.mxu0 %v249
    %281 = vmatpush1.bf16.msra.mxu0 %v248
    %282 = vmatprep.subr.bf16.mxu0 %v251
    %283 = vmatpush1.bf16.msra.mxu0 %v250
    %284 = vmatprep.subr.bf16.mxu0 0
    %285 = vmatpush1.bf16.msra.mxu0 0
    %286 = vmatprep.subr.bf16.mxu0 0
    %287 = vmatpush1.bf16.msra.mxu0 0
    %288 = vmatprep.subr.bf16.mxu0 0
    %289 = vmatpush1.bf16.msra.mxu0 0
    %290 = vmatprep.subr.bf16.mxu0 0
    %291 = vmatpush1.bf16.msra.mxu0 0
    %292 = vmatprep.subr.bf16.mxu0 0
    %293 = vmatpush1.bf16.msra.mxu0 0
    %294 = vmatprep.subr.bf16.mxu0 0
    %295 = vmatpush1.bf16.msra.mxu0 0
    %296 = vmatprep.subr.bf16.mxu0 0
    %297 = vmatpush1.bf16.msra.mxu0 0
    %298 = vmatprep.subr.bf16.mxu0 0
    %299 = vmatpush1.bf16.msra.mxu0 0
    %300 = vmatprep.mubr.bf16.mxu0 0
    %301 = vmatmul.mubr.bf16.gmra.mrb[0].mxu0 %v156
    %v302 = vpop.f32.mrb[0].mxu0
    %v303 = vadd.f32 0.0, %v302
    %v304 = vpop.f32.mrb[0].mxu0
    %v305 = vadd.f32 0.0, %v304
    %v306 = vpop.f32.mrb[0].mxu0
    %v307 = vadd.f32 0.0, %v306
    %v308 = vpop.f32.mrb[0].mxu0
    %v309 = vadd.f32 0.0, %v308
    %310 = vmatprep.mubr.bf16.mxu0 0
    %311 = vmatmul.mubr.bf16.gmra.mrb[0].mxu0 %v157
    %v312 = vpop.f32.mrb[0].mxu0
    %v313 = vadd.f32 0.0, %v312
    %v314 = vpop.f32.mrb[0].mxu0
    %v315 = vadd.f32 0.0, %v314
    %v316 = vpop.f32.mrb[0].mxu0
    %v317 = vadd.f32 0.0, %v316
    %v318 = vpop.f32.mrb[0].mxu0
    %v319 = vadd.f32 0.0, %v318
    %320 = vmatprep.mubr.bf16.mxu0 0
    %321 = vmatmul.mubr.bf16.gmra.mrb[0].mxu0 %v158
    %v322 = vpop.f32.mrb[0].mxu0
    %v323 = vadd.f32 0.0, %v322
    %v324 = vpop.f32.mrb[0].mxu0
    %v325 = vadd.f32 0.0, %v324
    %v326 = vpop.f32.mrb[0].mxu0
    %v327 = vadd.f32 0.0, %v326
    %v328 = vpop.f32.mrb[0].mxu0
    %v329 = vadd.f32 0.0, %v328
    %330 = vmatprep.mubr.bf16.mxu0 0
    %331 = vmatmul.mubr.bf16.gmra.mrb[0].mxu0 %v159
    %v332 = vpop.f32.mrb[0].mxu0
    %v333 = vadd.f32 0.0, %v332
    %v334 = vpop.f32.mrb[0].mxu0
    %v335 = vadd.f32 0.0, %v334
    %v336 = vpop.f32.mrb[0].mxu0
    %v337 = vadd.f32 0.0, %v336
    %v338 = vpop.f32.mrb[0].mxu0
    %v339 = vadd.f32 0.0, %v338
    %340 = vmatprep.mubr.bf16.mxu0 0
    %341 = vmatmul.mubr.bf16.gmra.mrb[0].mxu0 %v160
    %v342 = vpop.f32.mrb[0].mxu0
    %v343 = vadd.f32 0.0, %v342
    %v344 = vpop.f32.mrb[0].mxu0
    %v345 = vadd.f32 0.0, %v344
    %v346 = vpop.f32.mrb[0].mxu0
    %v347 = vadd.f32 0.0, %v346
    %v348 = vpop.f32.mrb[0].mxu0
    %v349 = vadd.f32 0.0, %v348
    %350 = vmatprep.mubr.bf16.mxu0 0
    %351 = vmatmul.mubr.bf16.gmra.mrb[0].mxu0 %v161
    %v352 = vpop.f32.mrb[0].mxu0
    %v353 = vadd.f32 0.0, %v352
    %v354 = vpop.f32.mrb[0].mxu0
    %v355 = vadd.f32 0.0, %v354
    %v356 = vpop.f32.mrb[0].mxu0
    %v357 = vadd.f32 0.0, %v356
    %v358 = vpop.f32.mrb[0].mxu0
    %v359 = vadd.f32 0.0, %v358
    %360 = vmatprep.mubr.bf16.mxu0 0
    %361 = vmatmul.mubr.bf16.gmra.mrb[0].mxu0 %v162
    %v362 = vpop.f32.mrb[0].mxu0
    %v363 = vadd.f32 0.0, %v362
    %v364 = vpop.f32.mrb[0].mxu0
    %v365 = vadd.f32 0.0, %v364
    %v366 = vpop.f32.mrb[0].mxu0
    %v367 = vadd.f32 0.0, %v366
    %v368 = vpop.f32.mrb[0].mxu0
    %v369 = vadd.f32 0.0, %v368
    %370 = vmatprep.mubr.bf16.mxu0 0
    %371 = vmatmul.mubr.bf16.gmra.mrb[0].mxu0 %v163
    %v372 = vpop.f32.mrb[0].mxu0
    %v373 = vadd.f32 0.0, %v372
    %v374 = vpop.f32.mrb[0].mxu0
    %v375 = vadd.f32 0.0, %v374
    %v376 = vpop.f32.mrb[0].mxu0
    %v377 = vadd.f32 0.0, %v376
    %v378 = vpop.f32.mrb[0].mxu0
    %v379 = vadd.f32 0.0, %v378
    %380 = vmatprep.mubr.bf16.mxu0 0
    %381 = vmatmul.mubr.bf16.gmra.mrb[0].mxu0 %v164
    %v382 = vpop.f32.mrb[0].mxu0
    %v383 = vadd.f32 0.0, %v382
    %v384 = vpop.f32.mrb[0].mxu0
    %v385 = vadd.f32 0.0, %v384
    %v386 = vpop.f32.mrb[0].mxu0
    %v387 = vadd.f32 0.0, %v386
    %v388 = vpop.f32.mrb[0].mxu0
    %v389 = vadd.f32 0.0, %v388
    %390 = vmatprep.mubr.bf16.mxu0 0
    %391 = vmatmul.mubr.bf16.gmra.mrb[0].mxu0 %v165
    %v392 = vpop.f32.mrb[0].mxu0
    %v393 = vadd.f32 0.0, %v392
    %v394 = vpop.f32.mrb[0].mxu0
    %v395 = vadd.f32 0.0, %v394
    %v396 = vpop.f32.mrb[0].mxu0
    %v397 = vadd.f32 0.0, %v396
    %v398 = vpop.f32.mrb[0].mxu0
    %v399 = vadd.f32 0.0, %v398
    %400 = vmatprep.mubr.bf16.mxu0 0
    %401 = vmatmul.mubr.bf16.gmra.mrb[0].mxu0 %v166
    %v402 = vpop.f32.mrb[0].mxu0
    %v403 = vadd.f32 0.0, %v402
    %v404 = vpop.f32.mrb[0].mxu0
    %v405 = vadd.f32 0.0, %v404
    %v406 = vpop.f32.mrb[0].mxu0
    %v407 = vadd.f32 0.0, %v406
    %v408 = vpop.f32.mrb[0].mxu0
    %v409 = vadd.f32 0.0, %v408
    %410 = vmatprep.mubr.bf16.mxu0 0
    %411 = vmatmul.mubr.bf16.gmra.mrb[0].mxu0 %v167
    %v412 = vpop.f32.mrb[0].mxu0
    %v413 = vadd.f32 0.0, %v412
    %v414 = vpop.f32.mrb[0].mxu0
    %v415 = vadd.f32 0.0, %v414
    %v416 = vpop.f32.mrb[0].mxu0
    %v417 = vadd.f32 0.0, %v416
    %v418 = vpop.f32.mrb[0].mxu0
    %v419 = vadd.f32 0.0, %v418
    %420 = vmatprep.mubr.bf16.mxu0 0
    %421 = vmatmul.mubr.bf16.gmra.mrb[0].mxu0 %v168
    %v422 = vpop.f32.mrb[0].mxu0
    %v423 = vadd.f32 0.0, %v422
    %v424 = vpop.f32.mrb[0].mxu0
    %v425 = vadd.f32 0.0, %v424
    %v426 = vpop.f32.mrb[0].mxu0
    %v427 = vadd.f32 0.0, %v426
    %v428 = vpop.f32.mrb[0].mxu0
    %v429 = vadd.f32 0.0, %v428
    %430 = vmatprep.mubr.bf16.mxu0 0
    %431 = vmatmul.mubr.bf16.gmra.mrb[0].mxu0 %v169
    %v432 = vpop.f32.mrb[0].mxu0
    %v433 = vadd.f32 0.0, %v432
    %v434 = vpop.f32.mrb[0].mxu0
    %v435 = vadd.f32 0.0, %v434
    %v436 = vpop.f32.mrb[0].mxu0
    %v437 = vadd.f32 0.0, %v436
    %v438 = vpop.f32.mrb[0].mxu0
    %v439 = vadd.f32 0.0, %v438
    %440 = vmatprep.mubr.bf16.mxu0 0
    %441 = vmatmul.mubr.bf16.gmra.mrb[0].mxu0 %v170
    %v442 = vpop.f32.mrb[0].mxu0
    %v443 = vadd.f32 0.0, %v442
    %v444 = vpop.f32.mrb[0].mxu0
    %v445 = vadd.f32 0.0, %v444
    %v446 = vpop.f32.mrb[0].mxu0
    %v447 = vadd.f32 0.0, %v446
    %v448 = vpop.f32.mrb[0].mxu0
    %v449 = vadd.f32 0.0, %v448
    %450 = vmatprep.mubr.bf16.mxu0 0
    %451 = vmatmul.mubr.bf16.gmra.mrb[0].mxu0 %v171
    %v452 = vpop.f32.mrb[0].mxu0
    %v453 = vadd.f32 0.0, %v452
    %v454 = vpop.f32.mrb[0].mxu0
    %v455 = vadd.f32 0.0, %v454
    %v456 = vpop.f32.mrb[0].mxu0
    %v457 = vadd.f32 0.0, %v456
    %v458 = vpop.f32.mrb[0].mxu0
    %v459 = vadd.f32 0.0, %v458
    %460 = vdwg.mxu0
    %v461 = vpack.c.bf16 %v307, %v303
    %v462 = vpack.c.bf16 %v317, %v313
    %v463 = vpack.c.bf16 %v327, %v323
    %v464 = vpack.c.bf16 %v337, %v333
    %v465 = vpack.c.bf16 %v347, %v343
    %v466 = vpack.c.bf16 %v357, %v353
    %v467 = vpack.c.bf16 %v367, %v363
    %v468 = vpack.c.bf16 %v377, %v373
    %v469 = vpack.c.bf16 %v387, %v383
    %v470 = vpack.c.bf16 %v397, %v393
    %v471 = vpack.c.bf16 %v407, %v403
    %v472 = vpack.c.bf16 %v417, %v413
    %v473 = vpack.c.bf16 %v427, %v423
    %v474 = vpack.c.bf16 %v437, %v433
    %v475 = vpack.c.bf16 %v447, %v443
    %v476 = vpack.c.bf16 %v457, %v453
    %v493 = vunpack.c.l.b16 %v461
    %v494 = vunpack.c.h.b16 %v461
    %v495 = vunpack.c.l.b16 %v462
    %v496 = vunpack.c.h.b16 %v462
    %v497 = vunpack.c.l.b16 %v463
    %v498 = vunpack.c.h.b16 %v463
    %v499 = vunpack.c.l.b16 %v464
    %v500 = vunpack.c.h.b16 %v464
    %v501 = vunpack.c.l.b16 %v465
    %v502 = vunpack.c.h.b16 %v465
    %v503 = vunpack.c.l.b16 %v466
    %v504 = vunpack.c.h.b16 %v466
    %v505 = vunpack.c.l.b16 %v467
    %v506 = vunpack.c.h.b16 %v467
    %v507 = vunpack.c.l.b16 %v468
    %v508 = vunpack.c.h.b16 %v468
    %v509 = vunpack.c.l.b16 %v469
    %v510 = vunpack.c.h.b16 %v469
    %v511 = vunpack.c.l.b16 %v470
    %v512 = vunpack.c.h.b16 %v470
    %v513 = vunpack.c.l.b16 %v471
    %v514 = vunpack.c.h.b16 %v471
    %v515 = vunpack.c.l.b16 %v472
    %v516 = vunpack.c.h.b16 %v472
    %v517 = vunpack.c.l.b16 %v473
    %v518 = vunpack.c.h.b16 %v473
    %v519 = vunpack.c.l.b16 %v474
    %v520 = vunpack.c.h.b16 %v474
    %v521 = vunpack.c.l.b16 %v475
    %v522 = vunpack.c.h.b16 %v475
    %v523 = vunpack.c.l.b16 %v476
    %v524 = vunpack.c.h.b16 %v476
    %v525 = vpack.c.b16 %v493, %v493
    %v526 = vpack.c.b16 %v494, %v494
    %v527 = vpack.c.b16 %v495, %v495
    %v528 = vpack.c.b16 %v496, %v496
    %v529 = vpack.c.b16 %v497, %v497
    %v530 = vpack.c.b16 %v498, %v498
    %v531 = vpack.c.b16 %v499, %v499
    %v532 = vpack.c.b16 %v500, %v500
    %v533 = vpack.c.b16 %v501, %v501
    %v534 = vpack.c.b16 %v502, %v502
    %v535 = vpack.c.b16 %v503, %v503
    %v536 = vpack.c.b16 %v504, %v504
    %v537 = vpack.c.b16 %v505, %v505
    %v538 = vpack.c.b16 %v506, %v506
    %v539 = vpack.c.b16 %v507, %v507
    %v540 = vpack.c.b16 %v508, %v508
    %v541 = vpack.c.b16 %v509, %v509
    %v542 = vpack.c.b16 %v510, %v510
    %v543 = vpack.c.b16 %v511, %v511
    %v544 = vpack.c.b16 %v512, %v512
    %v545 = vpack.c.b16 %v513, %v513
    %v546 = vpack.c.b16 %v514, %v514
    %v547 = vpack.c.b16 %v515, %v515
    %v548 = vpack.c.b16 %v516, %v516
    %v549 = vpack.c.b16 %v517, %v517
    %v550 = vpack.c.b16 %v518, %v518
    %v551 = vpack.c.b16 %v519, %v519
    %v552 = vpack.c.b16 %v520, %v520
    %v553 = vpack.c.b16 %v521, %v521
    %v554 = vpack.c.b16 %v522, %v522
    %v555 = vpack.c.b16 %v523, %v523
    %v556 = vpack.c.b16 %v524, %v524
    %589 = vst [vmem:[#allocation7] sm:$0xf] %v525
    %590 = vst [vmem:[#allocation7 + $0x4] sm:$0xf] %v526
    %591 = vst [vmem:[#allocation7 + $0x8] sm:$0xf] %v527
    %592 = vst [vmem:[#allocation7 + $0xc] sm:$0xf] %v528
    %593 = vst [vmem:[#allocation7 + $0x10] sm:$0xf] %v529
    %594 = vst [vmem:[#allocation7 + $0x14] sm:$0xf] %v530
    %595 = vst [vmem:[#allocation7 + $0x18] sm:$0xf] %v531
    %596 = vst [vmem:[#allocation7 + $0x1c] sm:$0xf] %v532
    %597 = vst [vmem:[#allocation7 + $0x20] sm:$0xf] %v533
    %598 = vst [vmem:[#allocation7 + $0x24] sm:$0xf] %v534
    %599 = vst [vmem:[#allocation7 + $0x28] sm:$0xf] %v535
    %600 = vst [vmem:[#allocation7 + $0x2c] sm:$0xf] %v536
    %601 = vst [vmem:[#allocation7 + $0x30] sm:$0xf] %v537
    %602 = vst [vmem:[#allocation7 + $0x34] sm:$0xf] %v538
    %603 = vst [vmem:[#allocation7 + $0x38] sm:$0xf] %v539
    %604 = vst [vmem:[#allocation7 + $0x3c] sm:$0xf] %v540
    %605 = vst [vmem:[#allocation7 + $0x40] sm:$0xf] %v541
    %606 = vst [vmem:[#allocation7 + $0x44] sm:$0xf] %v542
    %607 = vst [vmem:[#allocation7 + $0x48] sm:$0xf] %v543
    %608 = vst [vmem:[#allocation7 + $0x4c] sm:$0xf] %v544
    %609 = vst [vmem:[#allocation7 + $0x50] sm:$0xf] %v545
    %610 = vst [vmem:[#allocation7 + $0x54] sm:$0xf] %v546
    %611 = vst [vmem:[#allocation7 + $0x58] sm:$0xf] %v547
    %612 = vst [vmem:[#allocation7 + $0x5c] sm:$0xf] %v548
    %613 = vst [vmem:[#allocation7 + $0x60] sm:$0xf] %v549
    %614 = vst [vmem:[#allocation7 + $0x64] sm:$0xf] %v550
    %615 = vst [vmem:[#allocation7 + $0x68] sm:$0xf] %v551
    %616 = vst [vmem:[#allocation7 + $0x6c] sm:$0xf] %v552
    %617 = vst [vmem:[#allocation7 + $0x70] sm:$0xf] %v553
    %618 = vst [vmem:[#allocation7 + $0x74] sm:$0xf] %v554
    %619 = vst [vmem:[#allocation7 + $0x78] sm:$0xf] %v555
    %620 = vst [vmem:[#allocation7 + $0x7c] sm:$0xf] %v556
    %621 = vst [vmem:[#allocation8] sm:$0xff] %v305
    %622 = vst [vmem:[#allocation8 + $0x8] sm:$0xff] %v309
    %623 = vst [vmem:[#allocation8 + $0x10] sm:$0xff] %v315
    %624 = vst [vmem:[#allocation8 + $0x18] sm:$0xff] %v319
    %625 = vst [vmem:[#allocation8 + $0x20] sm:$0xff] %v325
    %626 = vst [vmem:[#allocation8 + $0x28] sm:$0xff] %v329
    %627 = vst [vmem:[#allocation8 + $0x30] sm:$0xff] %v335
    %628 = vst [vmem:[#allocation8 + $0x38] sm:$0xff] %v339
    %629 = vst [vmem:[#allocation8 + $0x40] sm:$0xff] %v345
    %630 = vst [vmem:[#allocation8 + $0x48] sm:$0xff] %v349
    %631 = vst [vmem:[#allocation8 + $0x50] sm:$0xff] %v355
    %632 = vst [vmem:[#allocation8 + $0x58] sm:$0xff] %v359
    %633 = vst [vmem:[#allocation8 + $0x60] sm:$0xff] %v365
    %634 = vst [vmem:[#allocation8 + $0x68] sm:$0xff] %v369
    %635 = vst [vmem:[#allocation8 + $0x70] sm:$0xff] %v375
    %636 = vst [vmem:[#allocation8 + $0x78] sm:$0xff] %v379
    %637 = vst [vmem:[#allocation8 + $0x80] sm:$0xff] %v385
    %638 = vst [vmem:[#allocation8 + $0x88] sm:$0xff] %v389
    %639 = vst [vmem:[#allocation8 + $0x90] sm:$0xff] %v395
    %640 = vst [vmem:[#allocation8 + $0x98] sm:$0xff] %v399
    %641 = vst [vmem:[#allocation8 + $0xa0] sm:$0xff] %v405
    %642 = vst [vmem:[#allocation8 + $0xa8] sm:$0xff] %v409
    %643 = vst [vmem:[#allocation8 + $0xb0] sm:$0xff] %v415
    %644 = vst [vmem:[#allocation8 + $0xb8] sm:$0xff] %v419
    %645 = vst [vmem:[#allocation8 + $0xc0] sm:$0xff] %v425
    %646 = vst [vmem:[#allocation8 + $0xc8] sm:$0xff] %v429
    %647 = vst [vmem:[#allocation8 + $0xd0] sm:$0xff] %v435
    %648 = vst [vmem:[#allocation8 + $0xd8] sm:$0xff] %v439
    %649 = vst [vmem:[#allocation8 + $0xe0] sm:$0xff] %v445
    %650 = vst [vmem:[#allocation8 + $0xe8] sm:$0xff] %v449
    %651 = vst [vmem:[#allocation8 + $0xf0] sm:$0xff] %v455
    %652 = vst [vmem:[#allocation8 + $0xf8] sm:$0xff] %v459
    // Predicated region
    $region18: #{tpu_custom_call.1} parent=1 // pred_check
      _
    $region19: #{tpu_custom_call.1} parent=1 // pred_check_branch
      %654 = sbr.rel (0) target = $region21
    $region20: #{tpu_custom_call.1} parent=1 // pred_region
      %s656 = ssub.s32 2048, 2048
      %657 = vsyncadd [#allocation4], %s656
      %s658 = sshll.u32 [#allocation7], 4
      %s659 = int_to_ptr.vmem [resolvable:$true] %s658
      %664 = dma.vmem_to_hbm [thread:$0]  %s659, 2048, %s2, [#allocation4], 64, 64, 4
    $region21: #{tpu_custom_call.1} parent=1 // pred_fallthru
      _
    // Predicated region
    $region22: #{tpu_custom_call.1} parent=1 // pred_check
      _
    $region23: #{tpu_custom_call.1} parent=1 // pred_check_branch
      %666 = sbr.rel (0) target = $region25
    $region24: #{tpu_custom_call.1} parent=1 // pred_region
      %s668 = ssub.s32 4096, 4096
      %669 = vsyncadd [#allocation9], %s668
      %s670 = sshll.u32 [#allocation8], 4
      %s671 = int_to_ptr.vmem [resolvable:$true] %s670
      %676 = dma.vmem_to_hbm [thread:$0]  %s671, 4096, %s3, [#allocation9], 128, 128, 8
    $region25: #{tpu_custom_call.1} parent=1 // pred_fallthru
      _
    // Predicated region
    $region26: #{tpu_custom_call.1} parent=1 // pred_check
      _
    $region27: #{tpu_custom_call.1} parent=1 // pred_check_branch
      %678 = sbr.rel (0) target = $region29
    $region28: #{tpu_custom_call.1} parent=1 // pred_region
      %679 = dma.done [#allocation4], 2048
    $region29: #{tpu_custom_call.1} parent=1 // pred_fallthru
      _
    // Predicated region
    $region30: #{tpu_custom_call.1} parent=1 // pred_check
      _
    $region31: #{tpu_custom_call.1} parent=1 // pred_check_branch
      %681 = sbr.rel (0) target = $region33
    $region32: #{tpu_custom_call.1} parent=1 // pred_region
      %682 = dma.done [#allocation9], 4096
    $region33: #{tpu_custom_call.1} parent=1 // pred_fallthru
      _
    %683 = vsyncpa [#allocation3], 1
    %684 = vsyncpa [#allocation6], 1
    %685 = vsyncpa [#allocation4], 1
    %686 = vsyncpa [#allocation9], 1

</llo_original>
